<compile_context>
chip_gen: v7x
topology: tpu7x:2x2x1
jax: 0.10.0
libtpu: 0.0.40
codegen_flags: <defaults>
</compile_context>

<pallas_src>
import functools

import jax
import jax.numpy as jnp
import numpy as np
from jax.experimental import pallas as pl
from jax.experimental.pallas import tpu as pltpu

BLOCK = 8                     # pixel_unshuffle block size
NUM_CELLS = BLOCK * BLOCK     # 64
NUM_CLASSES = NUM_CELLS + 1   # 65 (64 cells + dustbin); dustbin class index == 64
DEFAULT_TILE_COLS = 4096      # lane tile (multiple of 128); VMEM-safe on v5e/v6e/v7x


def _detector_loss_kernel(seed_ref, tl_ref, pred_ref, sum_ref, cnt_ref=None, *,
                          s_total, apply_mask):
    """One (image, cell-tile) block: noisy-argmax labels, masked CE, (sum[, count])."""
    j = pl.program_id(1)
    tn = tl_ref.shape[-1]                          # static tile width (lane axis)

    # ---- tie-break noise ~ U[0, 0.1): stateless shift/xor hash (no PRNG primitive,
    #      so it also lowers under interpret mode; pure VALU work on TPU). ----
    tile_id = pl.program_id(0) * pl.num_programs(1) + j
    base = (seed_ref[0].astype(jnp.uint32) * jnp.uint32(0x9E3779B9)
            + tile_id.astype(jnp.uint32) * jnp.uint32(0x85EBCA6B))
    cell_i = jax.lax.broadcasted_iota(jnp.int32, (NUM_CELLS, tn), 0)     # class idx
    col_u = jax.lax.broadcasted_iota(jnp.uint32, (NUM_CELLS, tn), 1)     # lane idx
    x = base + (cell_i.astype(jnp.uint32) << 16) + col_u
    x = x ^ (x << 13)                              # xorshift32 scramble (bijective)
    x = x ^ (x >> 17)
    x = x ^ (x << 5)
    x = x ^ (x >> 16)
    noise = ((x >> 8).astype(jnp.int32).astype(jnp.float32)
             * jnp.float32(0.1 / float(1 << 24)))                        # (64, tn)

    # ---- noisy argmax over convolution_labels = [2*labels, dustbin=1]. ----
    # Labels are a binary heatmap, so a cell score is either < 0.1 or >= 2.0 while the
    # dustbin score sits in [1, 1.1): `m64 >= 1` decides cell-vs-dustbin exactly.
    tl = tl_ref[0].astype(jnp.float32)             # (64, tn), binary 0/1
    s64 = 2.0 * tl + noise
    m64 = jnp.max(s64, axis=0, keepdims=True)      # (1, tn)
    arg64 = jnp.min(jnp.where(s64 >= m64, cell_i, NUM_CELLS), axis=0, keepdims=True)
    label = jnp.where(m64 >= 1.0, arg64, NUM_CELLS)                      # (1, tn)

    # ---- softmax cross entropy over the 65 classes (sublane axis). ----
    logits = pred_ref[0].astype(jnp.float32)       # (65, tn)
    mx = jnp.max(logits, axis=0, keepdims=True)
    lse = jnp.log(jnp.sum(jnp.exp(logits - mx), axis=0, keepdims=True)) + mx
    idx65 = jax.lax.broadcasted_iota(jnp.int32, (NUM_CLASSES, tn), 0)
    picked = jnp.sum(jnp.where(idx65 == label, logits, 0.0), axis=0, keepdims=True)

    # ---- ragged last tile + (optional) valid-mask weighting. ----
    col = jax.lax.broadcasted_iota(jnp.int32, (1, tn), 1)
    in_bounds = (j * tn + col) < s_total           # (1, tn) bool
    ce = jnp.where(in_bounds, lse - picked, 0.0)   # zero garbage/NaN columns FIRST
    if apply_mask:
        # Torch-faithful: validity comes from the (binary) true labels themselves
        # (prod over the 64 unshuffled pixels != 0  <=>  min > 0); v_mask contents
        # are never read by the reference module.
        w = (in_bounds
             & (jnp.min(tl, axis=0, keepdims=True) > 0.0)).astype(jnp.float32)
        sum_ref[...] = jnp.sum(ce * w, axis=1, keepdims=True)[None, None]
        cnt_ref[...] = jnp.sum(w, axis=1, keepdims=True)[None, None]
    else:
        # Unmasked: every in-bounds cell counts; wrapper divides by N*S statically.
        sum_ref[...] = jnp.sum(ce, axis=1, keepdims=True)[None, None]


def _pixel_unshuffle(x, r):
    """torch.nn.functional.pixel_unshuffle: (N,C,H,W) -> (N, C*r*r, H/r, W/r)."""
    n, c, h, w = x.shape
    hc, wc = h // r, w // r
    x = x.reshape(n, c, hc, r, wc, r)
    x = x.transpose(0, 1, 3, 5, 2, 4)
    return x.reshape(n, c * r * r, hc, wc)


def _pick_tile_cols(s, n_batch, tile_cols):
    """Lane tile: full S if it fits, else a large multiple of 128."""
    if tile_cols is None:
        tn = DEFAULT_TILE_COLS
        if n_batch == 1 and tn >= s >= 256:
            # v7x has two TensorCores: keep >= 2 grid steps so the parallel axes shard.
            tn = (((s + 1) // 2) + 127) // 128 * 128
    else:
        tn = int(tile_cols)
    if tn >= s:
        return s                                   # full-dim block (always legal)
    tn = max(128, (tn // 128) * 128)               # lane alignment
    return s if tn >= s else tn


def detector_loss(true_labels, pred, v_mask=None, *, seed=0, tile_cols=None):
    """JAX/Pallas equivalent of DectectorLoss.forward."""
    n, _, h, w = true_labels.shape
    _, c, hc, wc = pred.shape
    assert c == NUM_CLASSES and hc == h // BLOCK and wc == w // BLOCK
    s = hc * wc

    # Layout glue: labels -> (N, 64, S) int8 (binary heatmap -> exact); logits keep
    # their native class-major layout, (N, 65, S) is a pure reshape (no transpose).
    tl = _pixel_unshuffle(true_labels.astype(jnp.int8), BLOCK).reshape(n, NUM_CELLS, s)
    logits = pred.reshape(n, NUM_CLASSES, s)

    tn = _pick_tile_cols(s, n, tile_cols)
    gs = -(-s // tn)
    seed_arr = jnp.asarray([seed], dtype=jnp.int32)
    apply_mask = v_mask is not None

    kernel = functools.partial(_detector_loss_kernel, s_total=s, apply_mask=apply_mask)

    out_shape = [jax.ShapeDtypeStruct((n, gs, 1, 1), jnp.float32)]          # tile sums
    out_specs = [pl.BlockSpec((1, 1, 1, 1), lambda b, j, sref: (b, j, 0, 0))]
    if apply_mask:
        out_shape.append(jax.ShapeDtypeStruct((n, gs, 1, 1), jnp.float32))  # tile counts
        out_specs.append(pl.BlockSpec((1, 1, 1, 1), lambda b, j, sref: (b, j, 0, 0)))

    outs = pl.pallas_call(
        kernel,
        out_shape=tuple(out_shape),
        grid_spec=pltpu.PrefetchScalarGridSpec(
            num_scalar_prefetch=1,                                          # seed -> SMEM
            grid=(n, gs),
            in_specs=[
                pl.BlockSpec((1, NUM_CELLS, tn), lambda b, j, sref: (b, 0, j)),    # labels
                pl.BlockSpec((1, NUM_CLASSES, tn), lambda b, j, sref: (b, 0, j)),  # logits
            ],
            out_specs=tuple(out_specs),
        ),
        compiler_params=pltpu.CompilerParams(
            dimension_semantics=("parallel", "parallel"),
            vmem_limit_bytes=32 * 1024 * 1024),
    )(seed_arr, tl, logits)

    # CrossEntropyLoss(ignore_index=65) mean: sum over valid cells / count of valid
    # cells (NaN if everything is ignored, matching torch).
    if apply_mask:
        sums, cnts = outs
        return jnp.sum(sums) / jnp.sum(cnts)
    sums = outs[0] if isinstance(outs, (tuple, list)) else outs
    return jnp.sum(sums) / jnp.float32(n * s)


# ----------------------------------------------------------------------------------
# Test helpers (pure JAX reference + deterministic, tie-free label construction).
# ----------------------------------------------------------------------------------
def _reference_loss(true_labels, pred, v_mask=None):
    """Pure-JAX reference using the noiseless argmax (tests are constructed tie-free)."""
    n, _, h, w = true_labels.shape
    hc, wc = h // BLOCK, w // BLOCK
    m = n * hc * wc
    tl = _pixel_unshuffle(true_labels.astype(jnp.float32), BLOCK)
    tl = tl.transpose(0, 2, 3, 1).reshape(m, NUM_CELLS)
    conv = jnp.concatenate([2.0 * tl, jnp.ones((m, 1), jnp.float32)], axis=-1)
    labels = jnp.argmax(conv, axis=-1)
    if v_mask is not None:
        valid = (jnp.prod(tl, axis=-1) != 0.0)
    else:
        valid = jnp.ones((m,), bool)
    logits = pred.transpose(0, 2, 3, 1).reshape(m, NUM_CLASSES).astype(jnp.float32)
    lse = jax.nn.logsumexp(logits, axis=-1)
    picked = jnp.take_along_axis(logits, labels[:, None], axis=-1)[:, 0]
    per = (lse - picked) * valid.astype(jnp.float32)
    return jnp.sum(per) / jnp.sum(valid.astype(jnp.float32))


def _make_sparse_labels(n, h, w):
    """Binary label map with at most one interest point per 8x8 block (tie-free)."""
    hc, wc = h // BLOCK, w // BLOCK
    lab = np.zeros((n, 1, h, w), np.float32)
    for b in range(n):
        for i in range(hc):
            for j in range(wc):
                if (b + i + j) % 2 == 0:
                    dy = (i * 3 + j + b) % BLOCK
                    dx = (j * 5 + 2 * b) % BLOCK
                    lab[b, 0, i * BLOCK + dy, j * BLOCK + dx] = 1.0
    return jnp.asarray(lab)


if __name__ == "__main__":
    key = jax.random.PRNGKey(0)
    k1, k2, k3 = jax.random.split(key, 3)

    # --- Test 1: unmasked loss, single-tile path (N=2, H=W=32 -> S=16 cells). ---
    N, H, W = 2, 32, 32
    Hc, Wc = H // BLOCK, W // BLOCK
    tl1 = _make_sparse_labels(N, H, W)
    pred1 = jax.random.normal(k1, (N, NUM_CLASSES, Hc, Wc), jnp.float32)
    out1 = jax.block_until_ready(detector_loss(tl1, pred1, seed=7))
    ref1 = _reference_loss(tl1, pred1)
    assert jnp.isfinite(out1), "loss is not finite"
    assert jnp.allclose(out1, ref1, rtol=1e-5, atol=1e-5), (out1, ref1)

    # --- Test 2: multi-tile grid + ragged last tile (S=208 cells, tile=128). ---
    N2, H2, W2 = 2, 128, 104
    Hc2, Wc2 = H2 // BLOCK, W2 // BLOCK
    tl2 = _make_sparse_labels(N2, H2, W2)
    pred2 = jax.random.normal(k2, (N2, NUM_CLASSES, Hc2, Wc2), jnp.float32)
    out2 = jax.block_until_ready(detector_loss(tl2, pred2, seed=11, tile_cols=128))
    ref2 = _reference_loss(tl2, pred2)
    assert jnp.isfinite(out2), "loss is not finite"
    assert jnp.allclose(out2, ref2, rtol=1e-5, atol=1e-5), (out2, ref2)

    # --- Test 3: masked path (reproduces the torch valid-mask-from-labels behaviour).
    # First-64 logits are constant per cell so the loss does not depend on which
    # cell the noisy argmax picks inside an all-ones (valid) block.
    lab3 = np.array(tl1)
    lab3[0, 0, 0:8, 0:8] = 1.0            # block (n=0, i=0, j=0) fully set -> valid
    lab3[1, 0, 24:32, 24:32] = 1.0        # block (n=1, i=3, j=3) fully set -> valid
    tl3 = jnp.asarray(lab3)
    pred3 = jnp.concatenate(
        [jnp.full((N, NUM_CELLS, Hc, Wc), 0.3, jnp.float32),
         jax.random.normal(k3, (N, 1, Hc, Wc), jnp.float32)], axis=1)
    vmask = jnp.ones((N, 1, H, W), jnp.float32)
    out3 = jax.block_until_ready(detector_loss(tl3, pred3, v_mask=vmask, seed=3))
    ref3 = _reference_loss(tl3, pred3, v_mask=vmask)
    assert jnp.isfinite(out3), "masked loss is not finite"
    assert jnp.allclose(out3, ref3, rtol=1e-5, atol=1e-5), (out3, ref3)

    print("KERNEL_OK")
</pallas_src>

<mosaic_0001>
module attributes {stable_mosaic.version = 11 : i64} {
  func.func @_detector_loss_kernel(%arg0: i32, %arg1: i32, %arg2: memref<1xi32, #tpu.memory_space<smem>>, %arg3: memref<1x64x16xi8, #tpu.memory_space<vmem>>, %arg4: memref<1x65x16xf32, #tpu.memory_space<vmem>>, %arg5: memref<1x1x1x1xf32, #tpu.memory_space<vmem>>) attributes {dimension_semantics = [#tpu.dimension_semantics<parallel>, #tpu.dimension_semantics<parallel>], iteration_bounds = array<i64: 2, 1>, scalar_prefetch = 1 : i64, scratch_operands = 0 : i64, tpu.core_type = #tpu.core_type<tc>, window_params = [{transform_indices = @transform_0, window_bounds = array<i64: 1, 64, 16>}, {transform_indices = @transform_1, window_bounds = array<i64: 1, 65, 16>}, {transform_indices = @transform_2, window_bounds = array<i64: 1, 1, 1, 1>}]} {
    %c1_i32 = arith.constant 1 : i32
    %0 = arith.muli %arg0, %c1_i32 : i32
    %1 = arith.addi %0, %arg1 : i32
    %c0 = arith.constant 0 : index
    %2 = memref.load %arg2[%c0] : memref<1xi32, #tpu.memory_space<smem>>
    %c-1640531527_i32 = arith.constant -1640531527 : i32
    %3 = arith.muli %2, %c-1640531527_i32 : i32
    %c-2048144789_i32 = arith.constant -2048144789 : i32
    %4 = arith.muli %1, %c-2048144789_i32 : i32
    %5 = arith.addi %3, %4 : i32
    %6 = tpu.iota {dimensions = array<i32: 0>} : vector<64x16xi32>
    %7 = tpu.iota {dimensions = array<i32: 1>} : vector<64x16xi32>
    %c16_i32 = arith.constant 16 : i32
    %8 = vector.broadcast %c16_i32 : i32 to vector<64x16xi32>
    %9 = arith.shli %6, %8 : vector<64x16xi32>
    %10 = vector.broadcast %5 : i32 to vector<64x16xi32>
    %11 = arith.addi %10, %9 : vector<64x16xi32>
    %12 = arith.addi %11, %7 : vector<64x16xi32>
    %c13_i32 = arith.constant 13 : i32
    %13 = vector.broadcast %c13_i32 : i32 to vector<64x16xi32>
    %14 = arith.shli %12, %13 : vector<64x16xi32>
    %15 = arith.xori %12, %14 : vector<64x16xi32>
    %c17_i32 = arith.constant 17 : i32
    %16 = vector.broadcast %c17_i32 : i32 to vector<64x16xi32>
    %17 = arith.shrui %15, %16 : vector<64x16xi32>
    %18 = arith.xori %15, %17 : vector<64x16xi32>
    %c5_i32 = arith.constant 5 : i32
    %19 = vector.broadcast %c5_i32 : i32 to vector<64x16xi32>
    %20 = arith.shli %18, %19 : vector<64x16xi32>
    %21 = arith.xori %18, %20 : vector<64x16xi32>
    %c16_i32_0 = arith.constant 16 : i32
    %22 = vector.broadcast %c16_i32_0 : i32 to vector<64x16xi32>
    %23 = arith.shrui %21, %22 : vector<64x16xi32>
    %24 = arith.xori %21, %23 : vector<64x16xi32>
    %c8_i32 = arith.constant 8 : i32
    %25 = vector.broadcast %c8_i32 : i32 to vector<64x16xi32>
    %26 = arith.shrui %24, %25 : vector<64x16xi32>
    %27 = arith.sitofp %26 : vector<64x16xi32> to vector<64x16xf32>
    %cst = arith.constant 5.96046456E-9 : f32
    %28 = vector.broadcast %cst : f32 to vector<64x16xf32>
    %29 = arith.mulf %27, %28 : vector<64x16xf32>
    %c0_1 = arith.constant 0 : index
    %c0_2 = arith.constant 0 : index
    %c0_3 = arith.constant 0 : index
    %30 = vector.load %arg3[%c0_1, %c0_2, %c0_3] : memref<1x64x16xi8, #tpu.memory_space<vmem>>, vector<1x64x16xi8>
    %31 = vector.shape_cast %30 : vector<1x64x16xi8> to vector<64x16xi8>
    %32 = arith.sitofp %31 : vector<64x16xi8> to vector<64x16xf32>
    %cst_4 = arith.constant 2.000000e+00 : f32
    %33 = vector.broadcast %cst_4 : f32 to vector<64x16xf32>
    %34 = arith.mulf %33, %32 : vector<64x16xf32>
    %35 = arith.addf %34, %29 : vector<64x16xf32>
    %cst_5 = arith.constant dense<0xFF800000> : vector<16xf32>
    %36 = vector.multi_reduction <maximumf>, %35, %cst_5 [0] : vector<64x16xf32> to vector<16xf32>
    %37 = vector.shape_cast %36 : vector<16xf32> to vector<1x16xf32>
    %38 = vector.broadcast %37 : vector<1x16xf32> to vector<64x16xf32>
    %39 = arith.cmpf oge, %35, %38 : vector<64x16xf32>
    %c64_i32 = arith.constant 64 : i32
    %40 = vector.broadcast %c64_i32 : i32 to vector<64x16xi32>
    %41 = arith.select %39, %6, %40 : vector<64x16xi1>, vector<64x16xi32>
    %cst_6 = arith.constant dense<2147483647> : vector<16xi32>
    %42 = vector.multi_reduction <minsi>, %41, %cst_6 [0] : vector<64x16xi32> to vector<16xi32>
    %43 = vector.shape_cast %42 : vector<16xi32> to vector<1x16xi32>
    %cst_7 = arith.constant 1.000000e+00 : f32
    %44 = vector.broadcast %cst_7 : f32 to vector<1x16xf32>
    %45 = arith.cmpf oge, %37, %44 : vector<1x16xf32>
    %c64_i32_8 = arith.constant 64 : i32
    %46 = vector.broadcast %c64_i32_8 : i32 to vector<1x16xi32>
    %47 = arith.select %45, %43, %46 : vector<1x16xi1>, vector<1x16xi32>
    %c0_9 = arith.constant 0 : index
    %c0_10 = arith.constant 0 : index
    %c0_11 = arith.constant 0 : index
    %48 = vector.load %arg4[%c0_9, %c0_10, %c0_11] : memref<1x65x16xf32, #tpu.memory_space<vmem>>, vector<1x65x16xf32>
    %49 = vector.shape_cast %48 : vector<1x65x16xf32> to vector<65x16xf32>
    %cst_12 = arith.constant dense<0xFF800000> : vector<16xf32>
    %50 = vector.multi_reduction <maximumf>, %49, %cst_12 [0] : vector<65x16xf32> to vector<16xf32>
    %51 = vector.shape_cast %50 : vector<16xf32> to vector<1x16xf32>
    %52 = vector.broadcast %51 : vector<1x16xf32> to vector<65x16xf32>
    %53 = arith.subf %49, %52 : vector<65x16xf32>
    %54 = math.exp %53 : vector<65x16xf32>
    %cst_13 = arith.constant dense<0.000000e+00> : vector<16xf32>
    %55 = vector.multi_reduction <add>, %54, %cst_13 [0] : vector<65x16xf32> to vector<16xf32>
    %56 = vector.shape_cast %55 : vector<16xf32> to vector<1x16xf32>
    %57 = math.log %56 : vector<1x16xf32>
    %58 = arith.addf %57, %51 : vector<1x16xf32>
    %59 = tpu.iota {dimensions = array<i32: 0>} : vector<65x16xi32>
    %60 = vector.broadcast %47 : vector<1x16xi32> to vector<65x16xi32>
    %61 = arith.cmpi eq, %59, %60 : vector<65x16xi32>
    %cst_14 = arith.constant 0.000000e+00 : f32
    %62 = vector.broadcast %cst_14 : f32 to vector<65x16xf32>
    %63 = arith.select %61, %49, %62 : vector<65x16xi1>, vector<65x16xf32>
    %cst_15 = arith.constant dense<0.000000e+00> : vector<16xf32>
    %64 = vector.multi_reduction <add>, %63, %cst_15 [0] : vector<65x16xf32> to vector<16xf32>
    %65 = vector.shape_cast %64 : vector<16xf32> to vector<1x16xf32>
    %66 = tpu.iota {dimensions = array<i32: 1>} : vector<1x16xi32>
    %c16_i32_16 = arith.constant 16 : i32
    %67 = arith.muli %arg1, %c16_i32_16 : i32
    %68 = vector.broadcast %67 : i32 to vector<1x16xi32>
    %69 = arith.addi %68, %66 : vector<1x16xi32>
    %c16_i32_17 = arith.constant 16 : i32
    %70 = vector.broadcast %c16_i32_17 : i32 to vector<1x16xi32>
    %71 = arith.cmpi slt, %69, %70 : vector<1x16xi32>
    %72 = arith.subf %58, %65 : vector<1x16xf32>
    %cst_18 = arith.constant 0.000000e+00 : f32
    %73 = vector.broadcast %cst_18 : f32 to vector<1x16xf32>
    %74 = arith.select %71, %72, %73 : vector<1x16xi1>, vector<1x16xf32>
    %cst_19 = arith.constant dense<0.000000e+00> : vector<1xf32>
    %75 = vector.multi_reduction <add>, %74, %cst_19 [1] : vector<1x16xf32> to vector<1xf32>
    %76 = vector.shape_cast %75 : vector<1xf32> to vector<1x1xf32>
    %77 = vector.shape_cast %76 : vector<1x1xf32> to vector<1x1x1x1xf32>
    %c0_20 = arith.constant 0 : index
    %c0_21 = arith.constant 0 : index
    %c0_22 = arith.constant 0 : index
    %c0_23 = arith.constant 0 : index
    %78 = vector.load %arg5[%c0_20, %c0_21, %c0_22, %c0_23] : memref<1x1x1x1xf32, #tpu.memory_space<vmem>>, vector<1x1x1x1xf32>
    tpu.vector_store %arg5[%c0_20, %c0_21, %c0_22, %c0_23], %77 {strides = array<i32>} : memref<1x1x1x1xf32, #tpu.memory_space<vmem>>, vector<1x1x1x1xf32>,
    return
  }
  func.func @transform_0(%arg0: i32, %arg1: i32, %arg2: memref<1xi32, #tpu.memory_space<smem>>) -> (i32, i32, i32) {
    %c0_i32 = arith.constant 0 : i32
    %c0_i32_0 = arith.constant 0 : i32
    return %arg0, %c0_i32, %arg1 : i32, i32, i32
  }
  func.func @transform_1(%arg0: i32, %arg1: i32, %arg2: memref<1xi32, #tpu.memory_space<smem>>) -> (i32, i32, i32) {
    %c0_i32 = arith.constant 0 : i32
    %c0_i32_0 = arith.constant 0 : i32
    return %arg0, %c0_i32, %arg1 : i32, i32, i32
  }
  func.func @transform_2(%arg0: i32, %arg1: i32, %arg2: memref<1xi32, #tpu.memory_space<smem>>) -> (i32, i32, i32, i32) {
    %c0_i32 = arith.constant 0 : i32
    %c0_i32_0 = arith.constant 0 : i32
    %c0_i32_1 = arith.constant 0 : i32
    return %arg0, %arg1, %c0_i32, %c0_i32_0 : i32, i32, i32, i32
  }
}

</mosaic_0001>

<llo_original>
// kernel: tpu_custom_call.1
$region0: #{tpu_custom_call.1}
  #allocation0 [shape = 'u32[]', space=smem, size = 0x4, offset = 0x4, fixed_abs, tag = 'smem constant byte address 0x4 - core index']
  #allocation1 [shape = 'u32[144,128]{1,0:T(1,128)}', space=vmem, size = 0x12000, scoped, tag = 'internal scratch']
  #allocation2 [shape = 's32[1]{0}', space=sflag, size = 0x4, scoped, tag = 'scoped memory for tpu_custom_call.1']
  #allocation3 [shape = 's32[1]{0:T(128)S(6)}', space=smem, size = 0x200, scoped, tag = 'prefetched SMEM operand 0']
  %s0 = inlined_call_operand.<no memory space> [shape: s32[1], index: 0, kind: input, shape index: {}]
  %s1 = inlined_call_operand.vmem [shape: s8[2,64,16], index: 1, kind: input, shape index: {}]
  %s2 = inlined_call_operand.vmem [shape: f32[2,65,16], index: 2, kind: input, shape index: {}]
  %s3 = inlined_call_operand.vmem [shape: f32[2,1,1,1], index: 3, kind: output, shape index: {}]
  %s4 = sld [smem:[#allocation0]]
  $region41: #{tpu_custom_call.1} parent=0
    _
  %s6 = ssub.s32 1, %s4
  %s7 = scalar_select 0, %s6, %s4
  %8 = sst [smem:[#allocation3]] %s0
  loop: start=0, step=1, limit=4
  $region2: #{tpu_custom_call.1} parent=0 // loop_pre_header
    _
  $region3: #{tpu_custom_call.1} parent=0 // loop_header
    %s10 = sphi 0, %s14
    %p11 = scmp.ge.s32.totalorder %s10, 4
    %s17 = sphi 0, %s29
    %s18 = sphi 0, %s25
    %s19 = sphi 0, %s17
    %s20 = sphi 0, %s18
    %s21 = sphi 0, %s19
    %s22 = sphi 0, %s20
    %s34 = sphi 0, %s36
    %s37 = sphi 0, %s34
    %s38 = sphi 0, %s37
    %s54 = sphi 0, %s38
    %s62 = sphi 0, %s64
    %s65 = sphi 0, %s62
    %s66 = sphi 0, %s65
    %s82 = sphi 0, %s66
    %s90 = sphi 0, %s92
    %s93 = sphi 0, %s90
    %s94 = sphi 0, %s93
    %s110 = sphi 0, %s94
  $region4: #{tpu_custom_call.1} parent=0 // loop_header_branch
    %13 = sbr.rel (%p11) target = $region8
  $region5: #{tpu_custom_call.1} parent=0 // loop_body
    %s15 = ssub.s32 %s10, 1
    %s16 = ssub.s32 %s10, 2
    %s23 = sadd.s32 1, %s18
    %p24 = scmp.ge.s32.totalorder %s23, 1
    %s25 = scalar_select %p24, 0, %s23
    %s26 = sadd.s32 1, %s17
    %s27 = scalar_select %p24, %s26, %s17
    %p28 = scmp.ge.s32.totalorder %s27, 2
    %s29 = scalar_select %p28, 0, %s27
    %s30 = ssub.s32 %s17, %s29
    %s31 = ssub.s32 %s18, %s25
    %s32 = sor.u32 %s30, %s31
    %p33 = scmp.eq.s32.totalorder %s32, 0
    %s35 = sadd.s32 %s34, 1
    %s36 = scalar_select %p33, %s34, %s35
    %p39 = pneg %p33
    %p40 = scmp.eq.s32.totalorder %s10, 1
    %p41 = por %p39, %p40
    %p42 = scmp.ne.s32.totalorder %s34, %s37
    %p43 = scmp.eq.s32.totalorder %s10, 0
    %p44 = por %p42, %p43
    %p45 = scmp.ne.s32.totalorder %s34, %s37
    %p46 = scmp.eq.s32.totalorder %s15, 1
    %p47 = por %p45, %p46
    %p48 = scmp.ne.s32.totalorder %s37, %s38
    %p49 = scmp.eq.s32.totalorder %s15, 0
    %p50 = por %p48, %p49
    %p51 = scmp.ne.s32.totalorder %s37, %s38
    %p52 = scmp.eq.s32.totalorder %s16, 1
    %p53 = por %p51, %p52
    %p55 = scmp.ne.s32.totalorder %s38, %s54
    %p56 = scmp.eq.s32.totalorder %s16, 0
    %p57 = por %p55, %p56
    %s58 = ssub.s32 %s17, %s29
    %s59 = ssub.s32 %s18, %s25
    %s60 = sor.u32 %s58, %s59
    %p61 = scmp.eq.s32.totalorder %s60, 0
    %s63 = sadd.s32 %s62, 1
    %s64 = scalar_select %p61, %s62, %s63
    %p67 = pneg %p61
    %p68 = scmp.eq.s32.totalorder %s10, 1
    %p69 = por %p67, %p68
    %p70 = scmp.ne.s32.totalorder %s62, %s65
    %p71 = scmp.eq.s32.totalorder %s10, 0
    %p72 = por %p70, %p71
    %p73 = scmp.ne.s32.totalorder %s62, %s65
    %p74 = scmp.eq.s32.totalorder %s15, 1
    %p75 = por %p73, %p74
    %p76 = scmp.ne.s32.totalorder %s65, %s66
    %p77 = scmp.eq.s32.totalorder %s15, 0
    %p78 = por %p76, %p77
    %p79 = scmp.ne.s32.totalorder %s65, %s66
    %p80 = scmp.eq.s32.totalorder %s16, 1
    %p81 = por %p79, %p80
    %p83 = scmp.ne.s32.totalorder %s66, %s82
    %p84 = scmp.eq.s32.totalorder %s16, 0
    %p85 = por %p83, %p84
    %s86 = ssub.s32 %s17, %s29
    %s87 = ssub.s32 %s18, %s25
    %s88 = sor.u32 %s86, %s87
    %p89 = scmp.eq.s32.totalorder %s88, 0
    %s91 = sadd.s32 %s90, 1
    %s92 = scalar_select %p89, %s90, %s91
    %p95 = pneg %p89
    %p96 = scmp.eq.s32.totalorder %s10, 1
    %p97 = por %p95, %p96
    %p98 = scmp.ne.s32.totalorder %s90, %s93
    %p99 = scmp.eq.s32.totalorder %s10, 0
    %p100 = por %p98, %p99
    %p101 = scmp.ne.s32.totalorder %s90, %s93
    %p102 = scmp.eq.s32.totalorder %s15, 1
    %p103 = por %p101, %p102
    %p104 = scmp.ne.s32.totalorder %s93, %s94
    %p105 = scmp.eq.s32.totalorder %s15, 0
    %p106 = por %p104, %p105
    %p107 = scmp.ne.s32.totalorder %s93, %s94
    %p108 = scmp.eq.s32.totalorder %s16, 1
    %p109 = por %p107, %p108
    %p111 = scmp.ne.s32.totalorder %s94, %s110
    %p112 = scmp.eq.s32.totalorder %s16, 0
    %p113 = por %p111, %p112
    %p114 = scmp.le.s32.totalorder 1, %s10
    %p115 = scmp.lt.s32.totalorder %s10, 3
    %p116 = pnand %p114, %p115
    %p117 = pneg %p116
    // Predicated region
    $region9: #{tpu_custom_call.1} parent=5 // pred_check
      _
    $region10: #{tpu_custom_call.1} parent=5 // pred_check_branch
      %119 = sbr.rel (%p116) target = $region12
    $region11: #{tpu_custom_call.1} parent=5 // pred_region
      %s120 = ssub.s32 %s10, 1
    $region12: #{tpu_custom_call.1} parent=5 // pred_fallthru
      _
    %p121 = scmp.lt.s32.totalorder %s10, 2
    // Predicated region
    $region13: #{tpu_custom_call.1} parent=5 // pred_check
      %p122 = pneg %p121
    $region14: #{tpu_custom_call.1} parent=5 // pred_check_branch
      %124 = sbr.rel (%p122) target = $region16
    $region15: #{tpu_custom_call.1} parent=5 // pred_region
      // Predicated region
      $region17: #{tpu_custom_call.1} parent=15 // pred_check
        %p125 = pneg %p44
      $region18: #{tpu_custom_call.1} parent=15 // pred_check_branch
        %127 = sbr.rel (%p125) target = $region20
      $region19: #{tpu_custom_call.1} parent=15 // pred_region
        %p128 = scmp.lt.s32.totalorder %s17, 1
        %s129 = scalar_select %p128, %s17, 1
        %p130 = scmp.lt.s32.totalorder %s18, 0
        %s131 = scalar_select %p130, %s18, 0
        %s132 = smul.addr %s129, 2
        %s133 = sadd.s32 %s131, %s132
        %s134 = smul.addr %s133, 8
        %s135 = scalar_lea.vmem %s1, %s134
      $region20: #{tpu_custom_call.1} parent=15 // pred_fallthru
        _
      // Predicated region
      $region21: #{tpu_custom_call.1} parent=15 // pred_check
        %p136 = pneg %p72
      $region22: #{tpu_custom_call.1} parent=15 // pred_check_branch
        %138 = sbr.rel (%p136) target = $region24
      $region23: #{tpu_custom_call.1} parent=15 // pred_region
        %p139 = scmp.lt.s32.totalorder %s17, 1
        %s140 = scalar_select %p139, %s17, 1
        %p141 = scmp.lt.s32.totalorder %s18, 0
        %s142 = scalar_select %p141, %s18, 0
        %s143 = smul.addr %s140, 9
        %s144 = sadd.s32 %s142, %s143
        %s145 = smul.addr %s144, 8
        %s146 = scalar_lea.vmem %s2, %s145
      $region24: #{tpu_custom_call.1} parent=15 // pred_fallthru
        _
    $region16: #{tpu_custom_call.1} parent=5 // pred_fallthru
      _
    %p147 = scmp.le.s32.totalorder 1, %s10
    %p148 = scmp.lt.s32.totalorder %s10, 3
    %p149 = pnand %p147, %p148
    %p150 = pneg %p149
    // Predicated region
    $region25: #{tpu_custom_call.1} parent=5 // pred_check
      _
    $region26: #{tpu_custom_call.1} parent=5 // pred_check_branch
      %152 = sbr.rel (%p149) target = $region28
    $region27: #{tpu_custom_call.1} parent=5 // pred_region
      %s153 = ssub.s32 %s10, 1
      %p154 = scmp.lt.s32.totalorder %s19, 1
      %s155 = scalar_select %p154, %s19, 1
      %p156 = scmp.lt.s32.totalorder %s20, 0
      %s157 = scalar_select %p156, %s20, 0
      %s158 = smul.addr %s155, 2
      %s159 = sadd.s32 %s157, %s158
      %s160 = smul.addr %s159, 8
      %s161 = scalar_lea.vmem %s1, %s160
      %p162 = pneg %p50
      %p163 = pneg %p47
      %p164 = scmp.lt.s32.totalorder %s19, 1
      %s165 = scalar_select %p164, %s19, 1
      %p166 = scmp.lt.s32.totalorder %s20, 0
      %s167 = scalar_select %p166, %s20, 0
      %s168 = smul.addr %s165, 9
      %s169 = sadd.s32 %s167, %s168
      %s170 = smul.addr %s169, 8
      %s171 = scalar_lea.vmem %s2, %s170
      %p172 = pneg %p78
      %p173 = pneg %p75
      %p174 = pneg %p106
      %p175 = pneg %p103
      %p176 = scmp.lt.s32.totalorder %s19, 1
      %s177 = scalar_select %p176, %s19, 1
      %p178 = scmp.lt.s32.totalorder %s20, 0
      %s179 = scalar_select %p178, %s20, 0
      %s180 = sadd.s32 %s179, %s177
      %s181 = scalar_lea.vmem %s3, %s180
      %p182 = scmp.lt.s32.totalorder %s19, 1
      %s183 = scalar_select %p182, %s19, 1
      %p184 = scmp.lt.s32.totalorder %s20, 0
      %s185 = scalar_select %p184, %s20, 0
      %s186 = smul.addr %s183, 2
      %s187 = sadd.s32 %s185, %s186
      %s188 = smul.addr %s187, 8
      %s189 = scalar_lea.vmem %s1, %s188
      %p190 = scmp.lt.s32.totalorder %s19, 1
      %s191 = scalar_select %p190, %s19, 1
      %p192 = scmp.lt.s32.totalorder %s20, 0
      %s193 = scalar_select %p192, %s20, 0
      %s194 = smul.addr %s191, 9
      %s195 = sadd.s32 %s193, %s194
      %s196 = smul.addr %s195, 8
      %s197 = scalar_lea.vmem %s2, %s196
      %p198 = scmp.lt.s32.totalorder %s19, 1
      %s199 = scalar_select %p198, %s19, 1
      %p200 = scmp.lt.s32.totalorder %s20, 0
      %s201 = scalar_select %p200, %s20, 0
      %s202 = sadd.s32 %s201, %s199
      %s203 = scalar_lea.vmem %s3, %s202
      %s204 = sadd.s32 %s19, %s20
      %s205 = sld [smem:[#allocation3]]
      %s206 = smul.u32 %s205, 2654435769
      %s207 = smul.u32 %s204, 2246822507
      %s208 = sadd.s32 %s206, %s207
      %v209 = vlaneseq
      %v210 = vshrl.u32 %v209, 7
      %v211 = vadd.s32 %v210, 8
      %v212 = vadd.s32 %v210, 16
      %v213 = vadd.s32 %v210, 24
      %v214 = vadd.s32 %v210, 32
      %v215 = vadd.s32 %v210, 40
      %v216 = vadd.s32 %v210, 48
      %v217 = vadd.s32 %v210, 56
      %v218 = vlaneseq
      %v219 = vand.u32 %v218, 127
      %v220 = vshll.u32 %v210, 16
      %v221 = vshll.u32 %v211, 16
      %v222 = vshll.u32 %v212, 16
      %v223 = vshll.u32 %v213, 16
      %v224 = vshll.u32 %v214, 16
      %v225 = vshll.u32 %v215, 16
      %v226 = vshll.u32 %v216, 16
      %v227 = vshll.u32 %v217, 16
      %v228 = vstv %s208
      %v229 = vadd.s32 %v228, %v220
      %v230 = vadd.s32 %v228, %v221
      %v231 = vadd.s32 %v228, %v222
      %v232 = vadd.s32 %v228, %v223
      %v233 = vadd.s32 %v228, %v224
      %v234 = vadd.s32 %v228, %v225
      %v235 = vadd.s32 %v228, %v226
      %v236 = vadd.s32 %v228, %v227
      %v237 = vadd.s32 %v229, %v219
      %v238 = vadd.s32 %v230, %v219
      %v239 = vadd.s32 %v231, %v219
      %v240 = vadd.s32 %v232, %v219
      %v241 = vadd.s32 %v233, %v219
      %v242 = vadd.s32 %v234, %v219
      %v243 = vadd.s32 %v235, %v219
      %v244 = vadd.s32 %v236, %v219
      %v245 = vshll.u32 %v237, 13
      %v246 = vshll.u32 %v238, 13
      %v247 = vshll.u32 %v239, 13
      %v248 = vshll.u32 %v240, 13
      %v249 = vshll.u32 %v241, 13
      %v250 = vshll.u32 %v242, 13
      %v251 = vshll.u32 %v243, 13
      %v252 = vshll.u32 %v244, 13
      %v253 = vxor.u32 %v237, %v245
      %v254 = vxor.u32 %v238, %v246
      %v255 = vxor.u32 %v239, %v247
      %v256 = vxor.u32 %v240, %v248
      %v257 = vxor.u32 %v241, %v249
      %v258 = vxor.u32 %v242, %v250
      %v259 = vxor.u32 %v243, %v251
      %v260 = vxor.u32 %v244, %v252
      %v261 = vshrl.u32 %v253, 17
      %v262 = vshrl.u32 %v254, 17
      %v263 = vshrl.u32 %v255, 17
      %v264 = vshrl.u32 %v256, 17
      %v265 = vshrl.u32 %v257, 17
      %v266 = vshrl.u32 %v258, 17
      %v267 = vshrl.u32 %v259, 17
      %v268 = vshrl.u32 %v260, 17
      %v269 = vxor.u32 %v253, %v261
      %v270 = vxor.u32 %v254, %v262
      %v271 = vxor.u32 %v255, %v263
      %v272 = vxor.u32 %v256, %v264
      %v273 = vxor.u32 %v257, %v265
      %v274 = vxor.u32 %v258, %v266
      %v275 = vxor.u32 %v259, %v267
      %v276 = vxor.u32 %v260, %v268
      %v277 = vshll.u32 %v269, 5
      %v278 = vshll.u32 %v270, 5
      %v279 = vshll.u32 %v271, 5
      %v280 = vshll.u32 %v272, 5
      %v281 = vshll.u32 %v273, 5
      %v282 = vshll.u32 %v274, 5
      %v283 = vshll.u32 %v275, 5
      %v284 = vshll.u32 %v276, 5
      %v285 = vxor.u32 %v269, %v277
      %v286 = vxor.u32 %v270, %v278
      %v287 = vxor.u32 %v271, %v279
      %v288 = vxor.u32 %v272, %v280
      %v289 = vxor.u32 %v273, %v281
      %v290 = vxor.u32 %v274, %v282
      %v291 = vxor.u32 %v275, %v283
      %v292 = vxor.u32 %v276, %v284
      %v293 = vshrl.u32 %v285, 16
      %v294 = vshrl.u32 %v286, 16
      %v295 = vshrl.u32 %v287, 16
      %v296 = vshrl.u32 %v288, 16
      %v297 = vshrl.u32 %v289, 16
      %v298 = vshrl.u32 %v290, 16
      %v299 = vshrl.u32 %v291, 16
      %v300 = vshrl.u32 %v292, 16
      %v301 = vxor.u32 %v285, %v293
      %v302 = vxor.u32 %v286, %v294
      %v303 = vxor.u32 %v287, %v295
      %v304 = vxor.u32 %v288, %v296
      %v305 = vxor.u32 %v289, %v297
      %v306 = vxor.u32 %v290, %v298
      %v307 = vxor.u32 %v291, %v299
      %v308 = vxor.u32 %v292, %v300
      %v309 = vshrl.u32 %v301, 8
      %v310 = vshrl.u32 %v302, 8
      %v311 = vshrl.u32 %v303, 8
      %v312 = vshrl.u32 %v304, 8
      %v313 = vshrl.u32 %v305, 8
      %v314 = vshrl.u32 %v306, 8
      %v315 = vshrl.u32 %v307, 8
      %v316 = vshrl.u32 %v308, 8
      %v317 = vcvt.s32.f32 %v309
      %v318 = vcvt.s32.f32 %v310
      %v319 = vcvt.s32.f32 %v311
      %v320 = vcvt.s32.f32 %v312
      %v321 = vcvt.s32.f32 %v313
      %v322 = vcvt.s32.f32 %v314
      %v323 = vcvt.s32.f32 %v315
      %v324 = vcvt.s32.f32 %v316
      %v325 = vmul.f32 %v317, 5.9604646e-09
      %v326 = vmul.f32 %v318, 5.9604646e-09
      %v327 = vmul.f32 %v319, 5.9604646e-09
      %v328 = vmul.f32 %v320, 5.9604646e-09
      %v329 = vmul.f32 %v321, 5.9604646e-09
      %v330 = vmul.f32 %v322, 5.9604646e-09
      %v331 = vmul.f32 %v323, 5.9604646e-09
      %v332 = vmul.f32 %v324, 5.9604646e-09
      %v333 = vld [vmem:[%s189] sm:$0xff]
      %v334 = vld [vmem:[%s189 + $0x8] sm:$0xff]
      %v335 = vunpack.c.0.s8 %v333
      %v336 = vunpack.c.1.s8 %v333
      %v337 = vunpack.c.2.s8 %v333
      %v338 = vunpack.c.3.s8 %v333
      %v339 = vunpack.c.0.s8 %v334
      %v340 = vunpack.c.1.s8 %v334
      %v341 = vunpack.c.2.s8 %v334
      %v342 = vunpack.c.3.s8 %v334
      %v343 = vcvt.s32.f32 %v335
      %v344 = vcvt.s32.f32 %v336
      %v345 = vcvt.s32.f32 %v337
      %v346 = vcvt.s32.f32 %v338
      %v347 = vcvt.s32.f32 %v339
      %v348 = vcvt.s32.f32 %v340
      %v349 = vcvt.s32.f32 %v341
      %v350 = vcvt.s32.f32 %v342
      %v351 = vmul.f32 %v343, 2.0
      %v352 = vmul.f32 %v344, 2.0
      %v353 = vmul.f32 %v345, 2.0
      %v354 = vmul.f32 %v346, 2.0
      %v355 = vmul.f32 %v347, 2.0
      %v356 = vmul.f32 %v348, 2.0
      %v357 = vmul.f32 %v349, 2.0
      %v358 = vmul.f32 %v350, 2.0
      %v359 = vadd.f32 %v351, %v325
      %v360 = vadd.f32 %v352, %v326
      %v361 = vadd.f32 %v353, %v327
      %v362 = vadd.f32 %v354, %v328
      %v363 = vadd.f32 %v355, %v329
      %v364 = vadd.f32 %v356, %v330
      %v365 = vadd.f32 %v357, %v331
      %v366 = vadd.f32 %v358, %v332
      %vm367 = vcmask 130048
      %v368 = vsel %vm367, %v359, -inf
      %v369 = vsel %vm367, %v360, -inf
      %v370 = vsel %vm367, %v361, -inf
      %v371 = vsel %vm367, %v362, -inf
      %v372 = vsel %vm367, %v363, -inf
      %v373 = vmax.f32 %v368, %v372
      %v374 = vsel %vm367, %v364, -inf
      %v375 = vmax.f32 %v369, %v374
      %v376 = vsel %vm367, %v365, -inf
      %v377 = vmax.f32 %v370, %v376
      %v378 = vsel %vm367, %v366, -inf
      %v379 = vmax.f32 %v371, %v378
      %v380 = vmax.f32 %v373, %v375
      %v381 = vmax.f32 %v377, %v379
      %v382 = vmax.f32 %v380, %v381
      %v383 = vrot.slane %v382, 4
      %v384 = vmax.f32 %v382, %v383
      %v385 = vrot.slane %v384, 2
      %v386 = vmax.f32 %v384, %v385
      %v387 = vrot.slane %v386, 1
      %v388 = vmax.f32 %v386, %v387
      %vm389 = vcmp.ge.f32.partialorder %v359, %v388
      %vm390 = vcmp.ge.f32.partialorder %v360, %v388
      %vm391 = vcmp.ge.f32.partialorder %v361, %v388
      %vm392 = vcmp.ge.f32.partialorder %v362, %v388
      %vm393 = vcmp.ge.f32.partialorder %v363, %v388
      %vm394 = vcmp.ge.f32.partialorder %v364, %v388
      %vm395 = vcmp.ge.f32.partialorder %v365, %v388
      %vm396 = vcmp.ge.f32.partialorder %v366, %v388
      %v397 = vsel %vm389, %v210, 64
      %v398 = vsel %vm390, %v211, 64
      %v399 = vsel %vm391, %v212, 64
      %v400 = vsel %vm392, %v213, 64
      %v401 = vsel %vm393, %v214, 64
      %v402 = vsel %vm394, %v215, 64
      %v403 = vsel %vm395, %v216, 64
      %v404 = vsel %vm396, %v217, 64
      %v405 = vsel %vm367, %v397, 2147483647
      %v406 = vsel %vm367, %v398, 2147483647
      %v407 = vsel %vm367, %v399, 2147483647
      %v408 = vsel %vm367, %v400, 2147483647
      %v409 = vsel %vm367, %v401, 2147483647
      %vm410 = vcmp.lt.s32.totalorder %v405, %v409
      %v411 = vsel %vm410, %v405, %v409
      %v412 = vsel %vm367, %v402, 2147483647
      %vm413 = vcmp.lt.s32.totalorder %v406, %v412
      %v414 = vsel %vm413, %v406, %v412
      %v415 = vsel %vm367, %v403, 2147483647
      %vm416 = vcmp.lt.s32.totalorder %v407, %v415
      %v417 = vsel %vm416, %v407, %v415
      %v418 = vsel %vm367, %v404, 2147483647
      %vm419 = vcmp.lt.s32.totalorder %v408, %v418
      %v420 = vsel %vm419, %v408, %v418
      %vm421 = vcmp.lt.s32.totalorder %v411, %v414
      %v422 = vsel %vm421, %v411, %v414
      %vm423 = vcmp.lt.s32.totalorder %v417, %v420
      %v424 = vsel %vm423, %v417, %v420
      %vm425 = vcmp.lt.s32.totalorder %v422, %v424
      %v426 = vsel %vm425, %v422, %v424
      %v427 = vrot.slane %v426, 4
      %vm428 = vcmp.lt.s32.totalorder %v426, %v427
      %v429 = vsel %vm428, %v426, %v427
      %v430 = vrot.slane %v429, 2
      %vm431 = vcmp.lt.s32.totalorder %v429, %v430
      %v432 = vsel %vm431, %v429, %v430
      %v433 = vrot.slane %v432, 1
      %vm434 = vcmp.lt.s32.totalorder %v432, %v433
      %v435 = vsel %vm434, %v432, %v433
      %vm436 = vcmp.ge.f32.partialorder %v388, 1.0
      %v437 = vsel %vm436, %v435, 64
      %v438 = vld [vmem:[%s197] sm:$0xff]
      %v439 = vld [vmem:[%s197 + $0x8] sm:$0xff]
      %v440 = vld [vmem:[%s197 + $0x10] sm:$0xff]
      %v441 = vld [vmem:[%s197 + $0x18] sm:$0xff]
      %v442 = vld [vmem:[%s197 + $0x20] sm:$0xff]
      %v443 = vld [vmem:[%s197 + $0x28] sm:$0xff]
      %v444 = vld [vmem:[%s197 + $0x30] sm:$0xff]
      %v445 = vld [vmem:[%s197 + $0x38] sm:$0xff]
      %v446 = vld [vmem:[%s197 + $0x40] sm:$0x1]
      %v447 = vsel %vm367, %v438, -inf
      %v448 = vsel %vm367, %v439, -inf
      %v449 = vsel %vm367, %v440, -inf
      %v450 = vsel %vm367, %v441, -inf
      %v451 = vsel %vm367, %v442, -inf
      %v452 = vmax.f32 %v447, %v451
      %v453 = vsel %vm367, %v443, -inf
      %v454 = vmax.f32 %v448, %v453
      %v455 = vsel %vm367, %v444, -inf
      %v456 = vmax.f32 %v449, %v455
      %v457 = vsel %vm367, %v445, -inf
      %v458 = vmax.f32 %v450, %v457
      %vm459 = vcmask 122880
      %v460 = vsel %vm459, %v446, -inf
      %v461 = vmax.f32 %v452, %v460
      %v462 = vmax.f32 %v461, %v454
      %v463 = vmax.f32 %v456, %v458
      %v464 = vmax.f32 %v462, %v463
      %v465 = vrot.slane %v464, 4
      %v466 = vmax.f32 %v464, %v465
      %v467 = vrot.slane %v466, 2
      %v468 = vmax.f32 %v466, %v467
      %v469 = vrot.slane %v468, 1
      %v470 = vmax.f32 %v468, %v469
      %v471 = vsub.f32 %v438, %v470
      %v472 = vsub.f32 %v439, %v470
      %v473 = vsub.f32 %v440, %v470
      %v474 = vsub.f32 %v441, %v470
      %v475 = vsub.f32 %v442, %v470
      %v476 = vsub.f32 %v443, %v470
      %v477 = vsub.f32 %v444, %v470
      %v478 = vsub.f32 %v445, %v470
      %v479 = vsub.f32 %v446, %v470
      %v480 = vmul.f32 %v471, 1.442695
      %v481 = vpow.pop %v480
      %v482 = vmul.f32 %v472, 1.442695
      %v483 = vpow.pop %v482
      %v484 = vmul.f32 %v473, 1.442695
      %v485 = vpow.pop %v484
      %v486 = vmul.f32 %v474, 1.442695
      %v487 = vpow.pop %v486
      %v488 = vmul.f32 %v475, 1.442695
      %v489 = vpow.pop %v488
      %v490 = vmul.f32 %v476, 1.442695
      %v491 = vpow.pop %v490
      %v492 = vmul.f32 %v477, 1.442695
      %v493 = vpow.pop %v492
      %v494 = vmul.f32 %v478, 1.442695
      %v495 = vpow.pop %v494
      %v496 = vmul.f32 %v479, 1.442695
      %v497 = vpow.pop %v496
      %v498 = vsel %vm367, %v481, 0.0
      %v499 = vsel %vm367, %v483, 0.0
      %v500 = vadd.f32 %v498, %v499
      %v501 = vsel %vm367, %v485, 0.0
      %v502 = vadd.f32 %v500, %v501
      %v503 = vsel %vm367, %v487, 0.0
      %v504 = vadd.f32 %v502, %v503
      %v505 = vsel %vm367, %v489, 0.0
      %v506 = vadd.f32 %v504, %v505
      %v507 = vsel %vm367, %v491, 0.0
      %v508 = vadd.f32 %v506, %v507
      %v509 = vsel %vm367, %v493, 0.0
      %v510 = vadd.f32 %v508, %v509
      %v511 = vsel %vm367, %v495, 0.0
      %v512 = vadd.f32 %v510, %v511
      %v513 = vsel %vm459, %v497, 0.0
      %v514 = vadd.f32 %v512, %v513
      %v515 = vrot.slane %v514, 4
      %v516 = vadd.f32 %v514, %v515
      %v517 = vrot.slane %v516, 2
      %v518 = vadd.f32 %v516, %v517
      %v519 = vrot.slane %v518, 1
      %v520 = vadd.f32 %v518, %v519
      %v521 = vlog2.pop %v520
      %v522 = vmul.f32 %v521, 0.6931472
      %v523 = vadd.f32 %v522, %v470
      %v524 = vadd.s32 %v210, 64
      %vm525 = vcmp.eq.s32.totalorder %v210, %v437
      %vm526 = vcmp.eq.s32.totalorder %v211, %v437
      %vm527 = vcmp.eq.s32.totalorder %v212, %v437
      %vm528 = vcmp.eq.s32.totalorder %v213, %v437
      %vm529 = vcmp.eq.s32.totalorder %v214, %v437
      %vm530 = vcmp.eq.s32.totalorder %v215, %v437
      %vm531 = vcmp.eq.s32.totalorder %v216, %v437
      %vm532 = vcmp.eq.s32.totalorder %v217, %v437
      %vm533 = vcmp.eq.s32.totalorder %v524, %v437
      %v534 = vsel %vm525, %v438, 0.0
      %v535 = vsel %vm526, %v439, 0.0
      %v536 = vsel %vm527, %v440, 0.0
      %v537 = vsel %vm528, %v441, 0.0
      %v538 = vsel %vm529, %v442, 0.0
      %v539 = vsel %vm530, %v443, 0.0
      %v540 = vsel %vm531, %v444, 0.0
      %v541 = vsel %vm532, %v445, 0.0
      %v542 = vsel %vm533, %v446, 0.0
      %v543 = vsel %vm367, %v534, 0.0
      %v544 = vsel %vm367, %v535, 0.0
      %v545 = vadd.f32 %v543, %v544
      %v546 = vsel %vm367, %v536, 0.0
      %v547 = vadd.f32 %v545, %v546
      %v548 = vsel %vm367, %v537, 0.0
      %v549 = vadd.f32 %v547, %v548
      %v550 = vsel %vm367, %v538, 0.0
      %v551 = vadd.f32 %v549, %v550
      %v552 = vsel %vm367, %v539, 0.0
      %v553 = vadd.f32 %v551, %v552
      %v554 = vsel %vm367, %v540, 0.0
      %v555 = vadd.f32 %v553, %v554
      %v556 = vsel %vm367, %v541, 0.0
      %v557 = vadd.f32 %v555, %v556
      %v558 = vsel %vm459, %v542, 0.0
      %v559 = vadd.f32 %v557, %v558
      %v560 = vrot.slane %v559, 4
      %v561 = vadd.f32 %v559, %v560
      %v562 = vrot.slane %v561, 2
      %v563 = vadd.f32 %v561, %v562
      %v564 = vrot.slane %v563, 1
      %v565 = vadd.f32 %v563, %v564
      %s566 = smul.u32 %s20, 16
      %v567 = vstv %s566
      %v568 = vadd.s32 %v567, %v219
      %vm569 = vcmp.lt.s32.totalorder %v568, 16
      %v570 = vsub.f32 %v523, %v565
      %v571 = vsel %vm569, %v570, 0.0
      %v572 = vsel %vm367, %v571, 0.0
      %573 = vadd.xlane.f32.xlu0 %v572
      %v574 = vpop.xlane.xlu0 %573
      %vm575 = vcmask 0
      %576 = vst.msk [vmem:[%s203] sm:$0x1] %vm575, %v574
      %p577 = scmp.lt.s32.totalorder %s19, 1
      %s578 = scalar_select %p577, %s19, 1
      %p579 = scmp.lt.s32.totalorder %s20, 0
      %s580 = scalar_select %p579, %s20, 0
      %s581 = sadd.s32 %s580, %s578
      %s582 = scalar_lea.vmem %s3, %s581
      // Predicated region
      $region29: #{tpu_custom_call.1} parent=27 // pred_check
        %p583 = pneg %p103
      $region30: #{tpu_custom_call.1} parent=27 // pred_check_branch
        %585 = sbr.rel (%p583) target = $region32
      $region31: #{tpu_custom_call.1} parent=27 // pred_region
        _
      $region32: #{tpu_custom_call.1} parent=27 // pred_fallthru
        _
    $region28: #{tpu_custom_call.1} parent=5 // pred_fallthru
      _
    %p586 = scmp.le.s32.totalorder 2, %s10
    // Predicated region
    $region33: #{tpu_custom_call.1} parent=5 // pred_check
      %p587 = pneg %p586
    $region34: #{tpu_custom_call.1} parent=5 // pred_check_branch
      %589 = sbr.rel (%p587) target = $region36
    $region35: #{tpu_custom_call.1} parent=5 // pred_region
      %s590 = ssub.s32 %s10, 2
      // Predicated region
      $region37: #{tpu_custom_call.1} parent=35 // pred_check
        %p591 = pneg %p109
      $region38: #{tpu_custom_call.1} parent=35 // pred_check_branch
        %593 = sbr.rel (%p591) target = $region40
      $region39: #{tpu_custom_call.1} parent=35 // pred_region
        %p594 = scmp.lt.s32.totalorder %s21, 1
        %s595 = scalar_select %p594, %s21, 1
        %p596 = scmp.lt.s32.totalorder %s22, 0
        %s597 = scalar_select %p596, %s22, 0
        %s598 = sadd.s32 %s597, %s595
        %s599 = scalar_lea.vmem %s3, %s598
      $region40: #{tpu_custom_call.1} parent=35 // pred_fallthru
        _
    $region36: #{tpu_custom_call.1} parent=5 // pred_fallthru
      _
  $region6: #{tpu_custom_call.1} parent=0 // loop_footer
    %s14 = sadd.s32 1, %s10
  $region7: #{tpu_custom_call.1} parent=0 // loop_footer_branch
    %9 = sbr.rel target = $region3
  $region8: #{tpu_custom_call.1} parent=0 // loop_exit
    _

</llo_original>
